<compile_context>
chip_gen: v5e
topology: v5e:2x2
jax: 0.10.0
libtpu: 0.0.40
codegen_flags: <defaults>
</compile_context>

<pallas_src>
import numpy as np
import jax
import jax.numpy as jnp
from jax.experimental import pallas as pl
from jax.experimental.pallas import tpu as pltpu


def _round_up(x, m):
    return ((x + m - 1) // m) * m


# ---------------------------------------------------------------------------
# Kernel 0: xw[n] = sum_d X[n, d] * w[d]   (VPU multiply + lane reduce)
# ---------------------------------------------------------------------------
def _xw_kernel(x_ref, w_ref, o_ref):
    o_ref[...] = jnp.sum(
        x_ref[...].astype(jnp.float32) * w_ref[...].astype(jnp.float32),
        axis=-1, keepdims=True)


def _feature_matvec(x, w_row, *, tm=512):
    N, D = x.shape
    tm = N if N <= tm else tm
    assert tm == N or tm % 8 == 0
    return pl.pallas_call(
        _xw_kernel,
        out_shape=jax.ShapeDtypeStruct((N, 1), jnp.float32),
        grid=(pl.cdiv(N, tm),),
        in_specs=[
            pl.BlockSpec((tm, D), lambda i: (i, 0)),
            pl.BlockSpec((1, D), lambda i: (0, 0)),
        ],
        out_specs=pl.BlockSpec((tm, 1), lambda i: (i, 0)),
        compiler_params=pltpu.CompilerParams(
            dimension_semantics=("parallel",)),
    )(x, w_row)


# ---------------------------------------------------------------------------
# Kernel 1: score strip = A[strip, :] @ xw + b     (A streamed as bf16 strips)
# ---------------------------------------------------------------------------
def _score_kernel(a_ref, xw_ref, b_ref, o_ref):
    a = a_ref[...].astype(jnp.float32)          # bf16 HBM stream, f32 math
    o_ref[...] = (
        jnp.dot(a, xw_ref[...], preferred_element_type=jnp.float32)
        + b_ref[0, 0]
    )


def graphconv_score(x, w, b, adj, *, tm=512, tmx=512):
    """score = A @ (X @ W) + b, returned as (N, 1) float32."""
    N, D = x.shape
    xw = _feature_matvec(x, w.reshape(1, D), tm=tmx)          # (N, 1) f32
    # Adjacency entries are small integer edge counts -> exact in bf16;
    # halves the dominant N^2 HBM stream.
    adj_bf16 = adj.astype(jnp.bfloat16)
    tm = N if N <= tm else tm
    assert tm == N or tm % 8 == 0
    return pl.pallas_call(
        _score_kernel,
        out_shape=jax.ShapeDtypeStruct((N, 1), jnp.float32),
        grid=(pl.cdiv(N, tm),),
        in_specs=[
            pl.BlockSpec((tm, N), lambda i: (i, 0)),               # A row strip
            pl.BlockSpec((N, 1), lambda i: (0, 0)),                # xw (resident)
            pl.BlockSpec(memory_space=pltpu.MemorySpace.SMEM),     # bias scalar
        ],
        out_specs=pl.BlockSpec((tm, 1), lambda i: (i, 0)),
        compiler_params=pltpu.CompilerParams(
            dimension_semantics=("parallel",),
            vmem_limit_bytes=32 * 1024 * 1024),
    )(adj_bf16, xw, b)


# ---------------------------------------------------------------------------
# Kernel 2: gather rows by perm (manual double-buffered DMA) + tanh gating
# ---------------------------------------------------------------------------
def _gate_kernel(perm_ref, feat_hbm, sg_ref, o_ref, buf, sem):
    i = pl.program_id(0)
    nblk = pl.num_programs(0)
    rows = buf.shape[1]

    def issue(blk, slot):
        base = blk * rows
        for r in range(rows):                       # static unrolled loop
            src_row = perm_ref[base + r]            # SMEM scalar read
            pltpu.make_async_copy(
                feat_hbm.at[pl.ds(src_row, 1), :],
                buf.at[slot, pl.ds(r, 1), :],
                sem.at[slot],
            ).start()

    @pl.when(i == 0)
    def _prime():
        issue(0, 0)

    @pl.when(i + 1 < nblk)
    def _prefetch():
        issue(i + 1, (i + 1) % 2)

    slot = i % 2
    # All `rows` copies of this slot signal sem[slot]; drain with row-shaped waits.
    for r in range(rows):
        pltpu.make_async_copy(
            feat_hbm.at[pl.ds(0, 1), :],
            buf.at[slot, pl.ds(r, 1), :],
            sem.at[slot],
        ).wait()

    o_ref[...] = (buf[slot] * jnp.tanh(sg_ref[...])).astype(o_ref.dtype)


def gather_and_gate(feature, score, perm, *, rows_per_block=64):
    """out[j] = feature[perm[j]] * tanh(score[perm[j]]), shape (K, D)."""
    N, D = feature.shape
    K = int(perm.shape[0])
    r = max(8, min(rows_per_block, _round_up(K, 8)))
    assert r % 8 == 0
    kpad = _round_up(K, r)
    pad = kpad - K
    perm_pad = perm.astype(jnp.int32)
    if pad:
        perm_pad = jnp.concatenate([perm_pad, jnp.zeros((pad,), jnp.int32)])
    # Pre-gathered score (K scalars) -> one small (r, 1) block per grid step,
    # instead of K one-element DMAs; tanh stays in-kernel.
    sg = jnp.take(score, perm_pad).reshape(kpad, 1).astype(jnp.float32)
    nblk = kpad // r

    out = pl.pallas_call(
        _gate_kernel,
        out_shape=jax.ShapeDtypeStruct((kpad, D), feature.dtype),
        grid_spec=pltpu.PrefetchScalarGridSpec(
            num_scalar_prefetch=1,
            grid=(nblk,),
            in_specs=[
                pl.BlockSpec(memory_space=pl.ANY),              # feature in HBM
                pl.BlockSpec((r, 1), lambda i, perm: (i, 0)),   # gathered score
            ],
            out_specs=pl.BlockSpec((r, D), lambda i, perm: (i, 0)),
            scratch_shapes=[
                pltpu.VMEM((2, r, D), feature.dtype),           # double buffer
                pltpu.SemaphoreType.DMA((2,)),                  # per-slot sems
            ],
        ),
        # Manual double-buffering primes at i == 0 -> keep the axis sequential.
        compiler_params=pltpu.CompilerParams(
            dimension_semantics=("arbitrary",)),
    )(perm_pad, feature, sg)
    return out[:K]


# ---------------------------------------------------------------------------
# Glue: get_batch_id / topk  (index bookkeeping + argsort stay in plain JAX)
# ---------------------------------------------------------------------------
def get_batch_id(num_nodes_np):
    return np.concatenate(
        [np.full(int(n), i, dtype=np.int64) for i, n in enumerate(num_nodes_np)]
    )


def topk(score, ratio, batch_id, num_nodes_np):
    """score: [N] jnp array. Returns (perm [K] int32 jnp, k [B] np.int64)."""
    batch_size = len(num_nodes_np)
    max_num_nodes = int(num_nodes_np.max())
    cum = np.concatenate([[0], np.cumsum(num_nodes_np)[:-1]]).astype(np.int64)
    index = np.arange(score.shape[0], dtype=np.int64) - cum[batch_id] + batch_id * max_num_nodes

    dense = jnp.full(
        (batch_size * max_num_nodes,), jnp.finfo(score.dtype).min, score.dtype
    )
    dense = dense.at[index].set(score)
    dense = dense.reshape(batch_size, max_num_nodes)
    # argsort kept (instead of lax.top_k) so tie ordering matches torch.sort.
    perm = jnp.argsort(-dense, axis=-1)
    perm = perm + cum.reshape(-1, 1)
    perm = perm.reshape(-1)

    k = np.ceil(ratio * num_nodes_np.astype(np.float64)).astype(np.int64)
    mask = np.concatenate(
        [np.arange(int(k[i]), dtype=np.int64) + i * max_num_nodes for i in range(batch_size)]
    )
    perm = perm[mask].astype(jnp.int32)
    return perm, k


# ---------------------------------------------------------------------------
# SAGPool forward
# ---------------------------------------------------------------------------
def sagpool_forward(feature, adj, w, b, num_nodes_np, edges_np, batch_num_edges_np,
                    ratio=0.5, *, tm=512, rows_per_block=64):
    score2d = graphconv_score(feature, w, b, adj, tm=tm)       # [N, 1]  (Pallas)
    score = score2d[:, 0]

    batch_id = get_batch_id(num_nodes_np)
    perm, next_batch_num_nodes = topk(score, ratio, batch_id, num_nodes_np)

    # Launch the Pallas gather/gate kernel BEFORE the host edge bookkeeping so
    # the device_get below overlaps with device work.
    pooled_feature = gather_and_gate(feature, score, perm,
                                     rows_per_block=rows_per_block)   # [K, D]

    # edge bookkeeping of dgl.node_subgraph + torch.histogram (host glue).
    perm_np = np.asarray(jax.device_get(perm))
    keep = np.zeros(feature.shape[0], dtype=bool)
    keep[perm_np] = True
    src, dst = edges_np[:, 0], edges_np[:, 1]
    kept_edge = keep[src] & keep[dst]
    edge_offsets = np.concatenate([[0], np.cumsum(batch_num_edges_np)])
    next_batch_num_edges = np.array(
        [kept_edge[edge_offsets[i]:edge_offsets[i + 1]].sum() for i in range(len(num_nodes_np))],
        dtype=np.int64,
    )
    # TODO(synk): dgl.node_subgraph's graph-object reconstruction / node relabeling has
    # no Pallas equivalent; only its batch_num_nodes / batch_num_edges metadata is returned.
    graph_meta = {
        "batch_num_nodes": next_batch_num_nodes,
        "batch_num_edges": next_batch_num_edges,
    }
    return graph_meta, pooled_feature, perm


# ---------------------------------------------------------------------------
if __name__ == "__main__":
    in_dim = 32
    ratio = 0.5
    num_nodes = np.array([20, 28], dtype=np.int64)   # batch of 2 graphs, N = 48
    N = int(num_nodes.sum())

    # deterministic features / GraphConv params
    key = jax.random.PRNGKey(0)
    k_feat, k_w = jax.random.split(key)
    feature = jax.random.normal(k_feat, (N, in_dim), jnp.float32)
    w = jax.random.normal(k_w, (in_dim, 1), jnp.float32) * 0.1
    b = jnp.full((1, 1), 0.05, jnp.float32)

    # deterministic synthetic batched graph (edges within each graph)
    rng = np.random.default_rng(0)
    edge_list, batch_num_edges = [], []
    offset = 0
    for n in num_nodes:
        n = int(n)
        ne = 2 * n
        src = rng.integers(0, n, size=ne) + offset
        dst = rng.integers(0, n, size=ne) + offset
        edge_list.append(np.stack([src, dst], axis=1))
        batch_num_edges.append(ne)
        offset += n
    edges_np = np.concatenate(edge_list, axis=0).astype(np.int64)
    batch_num_edges_np = np.array(batch_num_edges, dtype=np.int64)

    adj_np = np.zeros((N, N), dtype=np.float32)
    np.add.at(adj_np, (edges_np[:, 1], edges_np[:, 0]), 1.0)  # A[dst, src] += 1
    adj = jnp.asarray(adj_np)

    # small tiles so the demo exercises multi-step grids + double buffering
    graph_meta, pooled_feature, perm = sagpool_forward(
        feature, adj, w, b, num_nodes, edges_np, batch_num_edges_np, ratio,
        tm=16, rows_per_block=8,
    )
    pooled_feature = jax.block_until_ready(pooled_feature)

    # reference check in plain JAX
    ref_score = (adj @ (feature @ w) + b)[:, 0]                # [N]
    bid = get_batch_id(num_nodes)
    ref_perm, ref_k = topk(ref_score, ratio, bid, num_nodes)
    ref_feat = feature[ref_perm] * jnp.tanh(ref_score[ref_perm]).reshape(-1, 1)

    assert np.array_equal(np.asarray(perm), np.asarray(ref_perm))
    np.testing.assert_allclose(
        np.asarray(pooled_feature), np.asarray(ref_feat), rtol=1e-5, atol=1e-5
    )
    assert np.array_equal(graph_meta["batch_num_nodes"], ref_k)

    print("KERNEL_OK")
</pallas_src>

<mosaic_0001>
module attributes {stable_mosaic.version = 11 : i64} {
  func.func @_xw_kernel(%arg0: i32, %arg1: memref<48x32xf32, #tpu.memory_space<vmem>>, %arg2: memref<1x32xf32, #tpu.memory_space<vmem>>, %arg3: memref<48x1xf32, #tpu.memory_space<vmem>>) attributes {dimension_semantics = [#tpu.dimension_semantics<parallel>], iteration_bounds = array<i64: 1>, scalar_prefetch = 0 : i64, scratch_operands = 0 : i64, tpu.core_type = #tpu.core_type<tc>, window_params = [{transform_indices = @transform_0, window_bounds = array<i64: 48, 32>}, {pipeline_mode = #tpu.pipeline_mode<synchronous>, transform_indices = @transform_1, window_bounds = array<i64: 1, 32>}, {transform_indices = @transform_2, window_bounds = array<i64: 48, 1>}]} {
    %c0 = arith.constant 0 : index
    %c0_0 = arith.constant 0 : index
    %0 = vector.load %arg1[%c0, %c0_0] : memref<48x32xf32, #tpu.memory_space<vmem>>, vector<48x32xf32>
    %c0_1 = arith.constant 0 : index
    %c0_2 = arith.constant 0 : index
    %1 = vector.load %arg2[%c0_1, %c0_2] : memref<1x32xf32, #tpu.memory_space<vmem>>, vector<1x32xf32>
    %2 = vector.broadcast %1 : vector<1x32xf32> to vector<48x32xf32>
    %3 = arith.mulf %0, %2 : vector<48x32xf32>
    %cst = arith.constant dense<0.000000e+00> : vector<48xf32>
    %4 = vector.multi_reduction <add>, %3, %cst [1] : vector<48x32xf32> to vector<48xf32>
    %5 = vector.shape_cast %4 : vector<48xf32> to vector<48x1xf32>
    %c0_3 = arith.constant 0 : index
    %c0_4 = arith.constant 0 : index
    %6 = vector.load %arg3[%c0_3, %c0_4] : memref<48x1xf32, #tpu.memory_space<vmem>>, vector<48x1xf32>
    tpu.vector_store %arg3[%c0_3, %c0_4], %5 {strides = array<i32>} : memref<48x1xf32, #tpu.memory_space<vmem>>, vector<48x1xf32>,
    return
  }
  func.func @transform_0(%arg0: i32) -> (i32, i32) {
    %c0_i32 = arith.constant 0 : i32
    %c0_i32_0 = arith.constant 0 : i32
    return %arg0, %c0_i32 : i32, i32
  }
  func.func @transform_1(%arg0: i32) -> (i32, i32) {
    %c0_i32 = arith.constant 0 : i32
    %c0_i32_0 = arith.constant 0 : i32
    %c0_i32_1 = arith.constant 0 : i32
    return %c0_i32, %c0_i32_0 : i32, i32
  }
  func.func @transform_2(%arg0: i32) -> (i32, i32) {
    %c0_i32 = arith.constant 0 : i32
    %c0_i32_0 = arith.constant 0 : i32
    return %arg0, %c0_i32 : i32, i32
  }
}

</mosaic_0001>

<llo_original>
// kernel: tpu_custom_call.1
$region0: #{tpu_custom_call.1}
  #allocation0 [shape = 'u32[]', space=smem, size = 0x4, offset = 0x4, fixed_abs, tag = 'smem constant byte address 0x4 - core index']
  #allocation1 [shape = 'u32[72,128]{1,0:T(1,128)}', space=vmem, size = 0x9000, scoped, tag = 'internal scratch']
  %s0 = inlined_call_operand.vmem [shape: f32[48,32], index: 0, kind: input, shape index: {}]
  %s1 = inlined_call_operand.vmem [shape: f32[1,32], index: 1, kind: input, shape index: {}]
  %s2 = inlined_call_operand.vmem [shape: f32[48,1], index: 2, kind: output, shape index: {}]
  %s3 = sld [smem:[#allocation0]]
  $region18: #{tpu_custom_call.1} parent=0
    _
  %s5 = ssub.s32 1, %s3
  %s6 = scalar_select 0, %s5, %s3
  // Predicated region
  $region2: #{tpu_custom_call.1} parent=0 // pred_check
    _
  $region3: #{tpu_custom_call.1} parent=0 // pred_check_branch
    %8 = sbr.rel (0) target = $region5
  $region4: #{tpu_custom_call.1} parent=0 // pred_region
    _
  $region5: #{tpu_custom_call.1} parent=0 // pred_fallthru
    _
  // Predicated region
  $region6: #{tpu_custom_call.1} parent=0 // pred_check
    _
  $region7: #{tpu_custom_call.1} parent=0 // pred_check_branch
    %10 = sbr.rel (0) target = $region9
  $region8: #{tpu_custom_call.1} parent=0 // pred_region
    _
  $region9: #{tpu_custom_call.1} parent=0 // pred_fallthru
    _
  %v11 = vld [vmem:[%s0] sm:$0xff]
  %v12 = vld [vmem:[%s0 + $0x8] sm:$0xff]
  %v13 = vld [vmem:[%s0 + $0x10] sm:$0xff]
  %v14 = vld [vmem:[%s0 + $0x18] sm:$0xff]
  %v15 = vld [vmem:[%s0 + $0x20] sm:$0xff]
  %v16 = vld [vmem:[%s0 + $0x28] sm:$0xff]
  %v17 = vld [vmem:[%s1] sm:$0x1]
  %v19 = vperm.slane %v17, 0
  %v21 = vmul.f32 %v11, %v19
  %v22 = vmul.f32 %v12, %v19
  %v23 = vmul.f32 %v13, %v19
  %v24 = vmul.f32 %v14, %v19
  %v25 = vmul.f32 %v15, %v19
  %v26 = vmul.f32 %v16, %v19
  %vm27 = vcmask 261120
  %v28 = vsel %vm27, %v21, 0.0
  %29 = vadd.xlane.f32.xlu0 %v28
  %v30 = vpop.xlane.xlu0 %29
  %v31 = vsel %vm27, %v22, 0.0
  %32 = vadd.xlane.f32.xlu0 %v31
  %v33 = vpop.xlane.xlu0 %32
  %v34 = vsel %vm27, %v23, 0.0
  %35 = vadd.xlane.f32.xlu0 %v34
  %v36 = vpop.xlane.xlu0 %35
  %v37 = vsel %vm27, %v24, 0.0
  %38 = vadd.xlane.f32.xlu0 %v37
  %v39 = vpop.xlane.xlu0 %38
  %v40 = vsel %vm27, %v25, 0.0
  %41 = vadd.xlane.f32.xlu0 %v40
  %v42 = vpop.xlane.xlu0 %41
  %v43 = vsel %vm27, %v26, 0.0
  %44 = vadd.xlane.f32.xlu0 %v43
  %v45 = vpop.xlane.xlu0 %44
  %vm46 = vcmask 7168
  %47 = vst.msk [vmem:[%s2] sm:$0xff] %vm46, %v30
  %48 = vst.msk [vmem:[%s2 + $0x8] sm:$0xff] %vm46, %v33
  %49 = vst.msk [vmem:[%s2 + $0x10] sm:$0xff] %vm46, %v36
  %50 = vst.msk [vmem:[%s2 + $0x18] sm:$0xff] %vm46, %v39
  %51 = vst.msk [vmem:[%s2 + $0x20] sm:$0xff] %vm46, %v42
  %52 = vst.msk [vmem:[%s2 + $0x28] sm:$0xff] %vm46, %v45
  // Predicated region
  $region10: #{tpu_custom_call.1} parent=0 // pred_check
    _
  $region11: #{tpu_custom_call.1} parent=0 // pred_check_branch
    %54 = sbr.rel (0) target = $region13
  $region12: #{tpu_custom_call.1} parent=0 // pred_region
    _
  $region13: #{tpu_custom_call.1} parent=0 // pred_fallthru
    _
  // Predicated region
  $region14: #{tpu_custom_call.1} parent=0 // pred_check
    _
  $region15: #{tpu_custom_call.1} parent=0 // pred_check_branch
    %56 = sbr.rel (0) target = $region17
  $region16: #{tpu_custom_call.1} parent=0 // pred_region
    _
  $region17: #{tpu_custom_call.1} parent=0 // pred_fallthru
    _

</llo_original>
